<compile_context>
chip_gen: v7x
topology: tpu7x:2x2x1
jax: 0.10.0
libtpu: 0.0.40
codegen_flags: <defaults>
</compile_context>

<pallas_src>
import math

import jax
import jax.numpy as jnp
from jax.experimental import pallas as pl
from jax.experimental.pallas import tpu as pltpu


_LANE = 128


def _round_up(x, m):
    return -(-x // m) * m


def _sublane(dtype):
    """Dtype-aware sublane packing: 8 for f32, 16 for bf16, 32 for int8/fp8."""
    itemsize = jnp.dtype(dtype).itemsize
    return max(8, 32 // max(1, itemsize))


def _tpu_vmem_capacity():
    try:
        cap = int(pltpu.get_tpu_info().vmem_capacity_bytes)
        if cap > 0:
            return cap
    except Exception:
        pass
    # Conservative default (v7x per-TensorCore VMEM) if the query fails.
    return 64 * 1024 * 1024


def _vmem_budget_and_limit():
    """(per-step working-set budget, scoped vmem limit, physical capacity)."""
    cap = _tpu_vmem_capacity()
    limit = max(32 * 1024 * 1024, min((cap * 3) // 4, 96 * 1024 * 1024))
    budget = limit // 2
    return budget, limit, cap


def _tensorcores_per_chip():
    try:
        info = pltpu.get_tpu_info()
    except Exception:
        return 1
    for name in ("num_cores_per_chip", "tensorcores_per_chip",
                 "tensor_cores_per_chip", "cores_per_chip"):
        v = getattr(info, name, None)
        if isinstance(v, int) and v > 1:
            return v
    return 1


def _dim_semantics(n_axes, multi_core):
    # Only CORE_PARALLEL actually shards a grid axis across TensorCores;
    # request it on the leading axis only when the chip has >1 core.
    lead = pltpu.CORE_PARALLEL if multi_core else pltpu.PARALLEL
    return (lead,) + (pltpu.PARALLEL,) * (n_axes - 1)


# --------------------------------------------------------------------------
# Path 1: direct HBM->HBM DMA concat
# --------------------------------------------------------------------------

def _concat_dma(xs, axis, offsets, sizes, out_shape, dtype, total_bytes):
    n = len(xs)
    ndim = len(out_shape)

    def kernel(*refs):
        in_refs = refs[:n]
        out_ref = refs[n]
        sem = refs[n + 1]
        copies = []
        for i, (off, sz) in enumerate(zip(offsets, sizes)):
            idx = ((slice(None),) * axis
                   + (slice(off, off + sz),)
                   + (slice(None),) * (ndim - axis - 1))
            cp = pltpu.make_async_copy(in_refs[i], out_ref.at[idx], sem.at[i])
            cp.start()
            copies.append(cp)
        for cp in copies:
            cp.wait()

    return pl.pallas_call(
        kernel,
        out_shape=jax.ShapeDtypeStruct(out_shape, dtype),
        in_specs=[pl.BlockSpec(memory_space=pl.ANY)] * n,
        out_specs=pl.BlockSpec(memory_space=pl.ANY),
        scratch_shapes=[pltpu.SemaphoreType.DMA((n,))],
        cost_estimate=pl.CostEstimate(flops=0, transcendentals=0,
                                      bytes_accessed=2 * total_bytes),
    )(*xs)


_DMA_SUPPORTED = None


def _dma_concat_supported():
    """One-time probe: does the HBM->HBM sliced-destination DMA lower & run
    correctly on this runtime?  Falls back to the tiled path otherwise."""
    global _DMA_SUPPORTED
    if _DMA_SUPPORTED is None:
        try:
            a = jnp.arange(2 * 3 * 16 * 16, dtype=jnp.float32).reshape(2, 3, 16, 16)
            b = (jnp.arange(2 * 5 * 16 * 16, dtype=jnp.float32)
                 .reshape(2, 5, 16, 16) * 0.5 + 7.0)
            nbytes = (a.size + b.size) * 4
            got = _concat_dma([a, b], 1, [0, 3], [3, 5], (2, 8, 16, 16),
                              jnp.float32, nbytes)
            got = jax.block_until_ready(got)
            want = jnp.concatenate([a, b], axis=1)
            _DMA_SUPPORTED = bool(jnp.array_equal(got, want))
        except Exception:
            _DMA_SUPPORTED = False
    return _DMA_SUPPORTED


def _dma_alignment_ok(axis, ndim, offsets, sizes, total, dtype):
    if axis < ndim - 2:
        return True                       # major-dim slice: no tiling constraint
    align = _LANE if axis == ndim - 1 else _sublane(dtype)
    vals = list(offsets) + list(sizes) + [total]
    return all(v % align == 0 for v in vals)


# --------------------------------------------------------------------------
# Path 2: tiled, pipelined VMEM copy (fallback)
# --------------------------------------------------------------------------

def _make_copy_kernel(offsets_and_sizes, collapsed_ndim):
    """Copy each input block into its static slice of the output block.
    In the collapsed layouts below the concat axis is always axis 1."""

    def kernel(*refs):
        out_ref = refs[-1]
        in_refs = refs[:-1]
        for ref, (off, sz) in zip(in_refs, offsets_and_sizes):
            idx = [slice(None)] * collapsed_ndim
            idx[1] = slice(off, off + sz)      # static slice -> zero-cost view
            out_ref[tuple(idx)] = ref[...]

    return kernel


def _pick_inner_tile(inner, sizes, total, itemsize, sublane, budget, lane_cap):
    """Lane tile: multiple of 128, as wide as the budget allows, preferring a
    divisor of `inner` (no masked partial edge block)."""
    if inner <= _LANE:
        return inner                         # full extent satisfies tiling rule
    padded_rows = (sum(_round_up(s, sublane) for s in sizes)
                   + _round_up(total, sublane))

    def step_bytes(t):
        return 2 * padded_rows * t * itemsize     # x2: double-buffered pipeline

    tile = min(lane_cap, (inner // _LANE) * _LANE)
    while tile > _LANE and step_bytes(tile) > budget:
        tile -= _LANE
    # Prefer a divisor of `inner` (unmasked full-width stores), but never give
    # up more than half the tile width for it.
    t = tile
    while t >= _LANE and t * 2 >= tile:
        if inner % t == 0:
            return t
        t -= _LANE
    return tile


def _concat_tiled(xs, axis, offsets, sizes, total, out_shape, dtype,
                  outer, inner, itemsize, total_bytes):
    budget, limit, cap = _vmem_budget_and_limit()
    sublane = _sublane(dtype)
    multi_core = _tensorcores_per_chip() > 1
    # Prefer growing the outer block over the lane tile on small-VMEM chips.
    lane_cap = 2048 if cap > 64 * 1024 * 1024 else 1024

    if inner > 1:
        # 3-D collapsed layout (outer, C_i, inner): concat axis = 1, lane dim
        # is a wide dense slab (H*W for NCHW channel concat).
        xs_c = [x.reshape(outer, s, inner) for x, s in zip(xs, sizes)]
        out_c_shape = (outer, total, inner)
        tile_in = _pick_inner_tile(inner, sizes, total, itemsize, sublane,
                                   budget, lane_cap)

        padded_rows = (sum(_round_up(s, sublane) for s in sizes)
                       + _round_up(total, sublane))
        row_bytes = max(1, 2 * padded_rows * tile_in * itemsize)
        tb_out = max(1, min(outer, budget // row_bytes))
        if multi_core and outer > 1:
            # Keep >= 2 steps on the core-parallel axis so both cores work.
            tb_out = min(tb_out, pl.cdiv(outer, 2))

        grid = (pl.cdiv(outer, tb_out), pl.cdiv(inner, tile_in))
        in_specs = [pl.BlockSpec((tb_out, s, tile_in), lambda o, t: (o, 0, t))
                    for s in sizes]
        out_spec = pl.BlockSpec((tb_out, total, tile_in),
                                lambda o, t: (o, 0, t))
        kernel = _make_copy_kernel(list(zip(offsets, sizes)), 3)
    else:
        # Concat axis is the minor (lane) dim.  Lane-unaligned pieces would
        # force masked partial stores -> let XLA's fused concat handle them.
        if not all(v % _LANE == 0 for v in (sizes + offsets + [total])):
            return jnp.concatenate(xs, axis=axis)
        xs_c = [x.reshape(outer, s) for x, s in zip(xs, sizes)]
        out_c_shape = (outer, total)

        row_bytes = max(1, 2 * (sum(sizes) + total) * itemsize)
        tb = max(1, budget // row_bytes)
        if multi_core and outer > 1:
            tb = min(tb, pl.cdiv(outer, 2))
        if tb >= outer:
            tb = outer
        else:
            tb = max(sublane, tb - tb % sublane)
            if tb >= outer:
                tb = outer

        grid = (pl.cdiv(outer, tb),)
        in_specs = [pl.BlockSpec((tb, s), lambda o: (o, 0)) for s in sizes]
        out_spec = pl.BlockSpec((tb, total), lambda o: (o, 0))
        kernel = _make_copy_kernel(list(zip(offsets, sizes)), 2)

    out_c = pl.pallas_call(
        kernel,
        out_shape=jax.ShapeDtypeStruct(out_c_shape, dtype),
        grid=grid,
        in_specs=in_specs,
        out_specs=out_spec,
        compiler_params=pltpu.CompilerParams(
            dimension_semantics=_dim_semantics(len(grid), multi_core),
            vmem_limit_bytes=limit,
        ),
        cost_estimate=pl.CostEstimate(flops=0, transcendentals=0,
                                      bytes_accessed=2 * total_bytes),
    )(*xs_c)

    return out_c.reshape(out_shape)


# --------------------------------------------------------------------------
# Public wrapper
# --------------------------------------------------------------------------

def concat_pallas(xs, dimension=1, *, xla_fallback_bytes=0, use_dma=True):
    """Pallas equivalent of torch.cat(xs, dim=dimension)."""
    xs = list(xs)
    assert len(xs) >= 1
    if len(xs) == 1:
        return xs[0]

    x0 = xs[0]
    ndim = x0.ndim
    axis = dimension % ndim
    dtype = x0.dtype
    for x in xs[1:]:
        assert x.ndim == ndim and x.dtype == dtype, \
            "all inputs must share rank and dtype (no torch-style promotion)"
        for a in range(ndim):
            if a != axis:
                assert x.shape[a] == x0.shape[a], "non-concat dims must match"

    # Drop empty inputs (torch.cat allows them; they contribute nothing).
    xs = [x for x in xs if x.shape[axis] > 0]
    sizes = [int(x.shape[axis]) for x in xs]
    total = sum(sizes)

    out_shape = list(x0.shape)
    out_shape[axis] = total
    out_shape = tuple(out_shape)

    outer = math.prod(x0.shape[:axis])
    inner = math.prod(x0.shape[axis + 1:])
    itemsize = jnp.dtype(dtype).itemsize
    total_bytes = sum(int(x.size) * itemsize for x in xs)

    # Degenerate / tiny cases -> native XLA concat (fuses with neighbours and
    # beats any hand kernel at KB scale).  Default threshold 0 keeps the
    # Pallas path active for the tests below.
    if (not xs or total == 0 or outer == 0 or inner == 0
            or total_bytes <= xla_fallback_bytes):
        if not xs or total == 0:
            return jnp.zeros(out_shape, dtype)
        return jnp.concatenate(xs, axis=axis)

    if len(xs) == 1:
        return xs[0]

    offsets = []
    acc = 0
    for s in sizes:
        offsets.append(acc)
        acc += s

    # ---- Path 1: direct HBM->HBM DMA (no VMEM staging, no grid steps) ----
    if (use_dma
            and _dma_alignment_ok(axis, ndim, offsets, sizes, total, dtype)
            and _dma_concat_supported()):
        try:
            return _concat_dma(xs, axis, offsets, sizes, out_shape, dtype,
                               total_bytes)
        except Exception:
            pass  # strided-destination lowering rejected -> tiled fallback

    # ---- Path 2: tiled, pipelined VMEM copy ----
    return _concat_tiled(xs, axis, offsets, sizes, total, out_shape, dtype,
                         outer, inner, itemsize, total_bytes)


class Concat:
    """JAX/Pallas mirror of the PyTorch Concat module (no parameters)."""

    def __init__(self, dimension=1):
        self.d = dimension

    def __call__(self, x):
        return concat_pallas(x, self.d)


if __name__ == "__main__":
    key = jax.random.PRNGKey(0)
    k1, k2, k3, k4, k5 = jax.random.split(key, 5)

    module = Concat(dimension=1)

    # NCHW inputs, concat along channel dim (d=1), as in typical YOLO usage.
    x1 = jax.random.normal(k1, (2, 4, 16, 16), dtype=jnp.float32)
    x2 = jax.random.normal(k2, (2, 6, 16, 16), dtype=jnp.float32)
    x3 = jax.random.normal(k3, (2, 2, 16, 16), dtype=jnp.float32)

    out = jax.block_until_ready(module([x1, x2, x3]))
    ref = jnp.concatenate([x1, x2, x3], axis=1)
    assert out.shape == (2, 12, 16, 16)
    assert out.dtype == jnp.float32
    assert bool(jnp.array_equal(out, ref))

    # Explicitly exercise the tiled/pipelined VMEM fallback path too.
    out_t = jax.block_until_ready(concat_pallas([x1, x2, x3], 1, use_dma=False))
    assert bool(jnp.array_equal(out_t, ref))

    # Second shape: wider spatial extent (multi-step lane grid in the tiled
    # path, strided-destination DMA in the primary path).
    y1 = jax.random.normal(k4, (2, 5, 16, 160), dtype=jnp.float32)
    y2 = jax.random.normal(k5, (2, 3, 16, 160), dtype=jnp.float32)
    ref2 = jnp.concatenate([y1, y2], axis=1)

    out2 = jax.block_until_ready(module([y1, y2]))
    assert bool(jnp.array_equal(out2, ref2))

    out2_t = jax.block_until_ready(concat_pallas([y1, y2], 1, use_dma=False))
    assert bool(jnp.array_equal(out2_t, ref2))

    print("KERNEL_OK")
</pallas_src>

<mosaic_0001>
module attributes {stable_mosaic.version = 11 : i64} {
  func.func @kernel(%arg0: memref<2x3x16x16xf32, #tpu.memory_space<any>>, %arg1: memref<2x5x16x16xf32, #tpu.memory_space<any>>, %arg2: memref<2x8x16x16xf32, #tpu.memory_space<any>>, %arg3: memref<2x!tpu.dma_semaphore, #tpu.memory_space<semaphore_mem>>) attributes {dimension_semantics = [], scalar_prefetch = 0 : i64, scratch_operands = 1 : i64, tpu.core_type = #tpu.core_type<tc>} {
    %c0_i32 = arith.constant 0 : i32
    %c0_i32_0 = arith.constant 0 : i32
    %c0_i32_1 = arith.constant 0 : i32
    %c0_i32_2 = arith.constant 0 : i32
    %c0_i32_3 = arith.constant 0 : i32
    %0 = tpu.memref_slice %arg2[%c0_i32_0, %c0_i32_1, %c0_i32_2, %c0_i32_3] : memref<2x8x16x16xf32, #tpu.memory_space<any>> -> memref<2x3x16x16xf32, #tpu.memory_space<any>>
    %1 = tpu.memref_slice %arg3[%c0_i32] : memref<2x!tpu.dma_semaphore, #tpu.memory_space<semaphore_mem>> -> memref<1x!tpu.dma_semaphore, #tpu.memory_space<semaphore_mem>>
    %2 = tpu.memref_squeeze %1 : memref<1x!tpu.dma_semaphore, #tpu.memory_space<semaphore_mem>> -> memref<!tpu.dma_semaphore, #tpu.memory_space<semaphore_mem>>
    tpu.enqueue_dma source(%arg0 : memref<2x3x16x16xf32, #tpu.memory_space<any>>) target(%0 : memref<2x3x16x16xf32, #tpu.memory_space<any>>) target_semaphore(%2 : memref<!tpu.dma_semaphore, #tpu.memory_space<semaphore_mem>>)
    %c1_i32 = arith.constant 1 : i32
    %c0_i32_4 = arith.constant 0 : i32
    %c3_i32 = arith.constant 3 : i32
    %c0_i32_5 = arith.constant 0 : i32
    %c0_i32_6 = arith.constant 0 : i32
    %3 = tpu.memref_slice %arg2[%c0_i32_4, %c3_i32, %c0_i32_5, %c0_i32_6] : memref<2x8x16x16xf32, #tpu.memory_space<any>> -> memref<2x5x16x16xf32, #tpu.memory_space<any>>
    %4 = tpu.memref_slice %arg3[%c1_i32] : memref<2x!tpu.dma_semaphore, #tpu.memory_space<semaphore_mem>> -> memref<1x!tpu.dma_semaphore, #tpu.memory_space<semaphore_mem>>
    %5 = tpu.memref_squeeze %4 : memref<1x!tpu.dma_semaphore, #tpu.memory_space<semaphore_mem>> -> memref<!tpu.dma_semaphore, #tpu.memory_space<semaphore_mem>>
    tpu.enqueue_dma source(%arg1 : memref<2x5x16x16xf32, #tpu.memory_space<any>>) target(%3 : memref<2x5x16x16xf32, #tpu.memory_space<any>>) target_semaphore(%5 : memref<!tpu.dma_semaphore, #tpu.memory_space<semaphore_mem>>)
    %c0_i32_7 = arith.constant 0 : i32
    %c0_i32_8 = arith.constant 0 : i32
    %c0_i32_9 = arith.constant 0 : i32
    %c0_i32_10 = arith.constant 0 : i32
    %c0_i32_11 = arith.constant 0 : i32
    %6 = tpu.memref_slice %arg2[%c0_i32_8, %c0_i32_9, %c0_i32_10, %c0_i32_11] : memref<2x8x16x16xf32, #tpu.memory_space<any>> -> memref<2x3x16x16xf32, #tpu.memory_space<any>>
    %7 = tpu.memref_slice %arg3[%c0_i32_7] : memref<2x!tpu.dma_semaphore, #tpu.memory_space<semaphore_mem>> -> memref<1x!tpu.dma_semaphore, #tpu.memory_space<semaphore_mem>>
    %8 = tpu.memref_squeeze %7 : memref<1x!tpu.dma_semaphore, #tpu.memory_space<semaphore_mem>> -> memref<!tpu.dma_semaphore, #tpu.memory_space<semaphore_mem>>
    tpu.wait_dma2 semaphore(%8 : memref<!tpu.dma_semaphore, #tpu.memory_space<semaphore_mem>>) src(%arg0 : memref<2x3x16x16xf32, #tpu.memory_space<any>>) dst(%6 : memref<2x3x16x16xf32, #tpu.memory_space<any>>)
    %c1_i32_12 = arith.constant 1 : i32
    %c0_i32_13 = arith.constant 0 : i32
    %c3_i32_14 = arith.constant 3 : i32
    %c0_i32_15 = arith.constant 0 : i32
    %c0_i32_16 = arith.constant 0 : i32
    %9 = tpu.memref_slice %arg2[%c0_i32_13, %c3_i32_14, %c0_i32_15, %c0_i32_16] : memref<2x8x16x16xf32, #tpu.memory_space<any>> -> memref<2x5x16x16xf32, #tpu.memory_space<any>>
    %10 = tpu.memref_slice %arg3[%c1_i32_12] : memref<2x!tpu.dma_semaphore, #tpu.memory_space<semaphore_mem>> -> memref<1x!tpu.dma_semaphore, #tpu.memory_space<semaphore_mem>>
    %11 = tpu.memref_squeeze %10 : memref<1x!tpu.dma_semaphore, #tpu.memory_space<semaphore_mem>> -> memref<!tpu.dma_semaphore, #tpu.memory_space<semaphore_mem>>
    tpu.wait_dma2 semaphore(%11 : memref<!tpu.dma_semaphore, #tpu.memory_space<semaphore_mem>>) src(%arg1 : memref<2x5x16x16xf32, #tpu.memory_space<any>>) dst(%9 : memref<2x5x16x16xf32, #tpu.memory_space<any>>)
    return
  }
}

module attributes {stable_mosaic.version = 11 : i64} {
  func.func @kernel(%arg0: i32, %arg1: i32, %arg2: memref<2x4x256xf32, #tpu.memory_space<vmem>>, %arg3: memref<2x6x256xf32, #tpu.memory_space<vmem>>, %arg4: memref<2x2x256xf32, #tpu.memory_space<vmem>>, %arg5: memref<2x12x256xf32, #tpu.memory_space<vmem>>) attributes {dimension_semantics = [#tpu.dimension_semantics<parallel>, #tpu.dimension_semantics<parallel>], iteration_bounds = array<i64: 1, 1>, scalar_prefetch = 0 : i64, scratch_operands = 0 : i64, tpu.core_type = #tpu.core_type<tc>, window_params = [{transform_indices = @transform_0, window_bounds = array<i64: 2, 4, 256>}, {transform_indices = @transform_1, window_bounds = array<i64: 2, 6, 256>}, {transform_indices = @transform_2, window_bounds = array<i64: 2, 2, 256>}, {transform_indices = @transform_3, window_bounds = array<i64: 2, 12, 256>}]} {
    %c0 = arith.constant 0 : index
    %c0_0 = arith.constant 0 : index
    %c0_1 = arith.constant 0 : index
    %0 = vector.load %arg2[%c0, %c0_0, %c0_1] : memref<2x4x256xf32, #tpu.memory_space<vmem>>, vector<2x4x256xf32>
    %c0_2 = arith.constant 0 : index
    %c0_3 = arith.constant 0 : index
    %c0_4 = arith.constant 0 : index
    %1 = vector.load %arg5[%c0_2, %c0_3, %c0_4] : memref<2x12x256xf32, #tpu.memory_space<vmem>>, vector<2x4x256xf32>
    tpu.vector_store %arg5[%c0_2, %c0_3, %c0_4], %0 {strides = array<i32>} : memref<2x12x256xf32, #tpu.memory_space<vmem>>, vector<2x4x256xf32>,
    %c0_5 = arith.constant 0 : index
    %c0_6 = arith.constant 0 : index
    %c0_7 = arith.constant 0 : index
    %2 = vector.load %arg3[%c0_5, %c0_6, %c0_7] : memref<2x6x256xf32, #tpu.memory_space<vmem>>, vector<2x6x256xf32>
    %c0_8 = arith.constant 0 : index
    %c4 = arith.constant 4 : index
    %c0_9 = arith.constant 0 : index
    %3 = vector.load %arg5[%c0_8, %c4, %c0_9] : memref<2x12x256xf32, #tpu.memory_space<vmem>>, vector<2x6x256xf32>
    tpu.vector_store %arg5[%c0_8, %c4, %c0_9], %2 {strides = array<i32>} : memref<2x12x256xf32, #tpu.memory_space<vmem>>, vector<2x6x256xf32>,
    %c0_10 = arith.constant 0 : index
    %c0_11 = arith.constant 0 : index
    %c0_12 = arith.constant 0 : index
    %4 = vector.load %arg4[%c0_10, %c0_11, %c0_12] : memref<2x2x256xf32, #tpu.memory_space<vmem>>, vector<2x2x256xf32>
    %c0_13 = arith.constant 0 : index
    %c10 = arith.constant 10 : index
    %c0_14 = arith.constant 0 : index
    %5 = vector.load %arg5[%c0_13, %c10, %c0_14] : memref<2x12x256xf32, #tpu.memory_space<vmem>>, vector<2x2x256xf32>
    tpu.vector_store %arg5[%c0_13, %c10, %c0_14], %4 {strides = array<i32>} : memref<2x12x256xf32, #tpu.memory_space<vmem>>, vector<2x2x256xf32>,
    return
  }
  func.func @transform_0(%arg0: i32, %arg1: i32) -> (i32, i32, i32) {
    %c0_i32 = arith.constant 0 : i32
    %c0_i32_0 = arith.constant 0 : i32
    return %arg0, %c0_i32, %arg1 : i32, i32, i32
  }
  func.func @transform_1(%arg0: i32, %arg1: i32) -> (i32, i32, i32) {
    %c0_i32 = arith.constant 0 : i32
    %c0_i32_0 = arith.constant 0 : i32
    return %arg0, %c0_i32, %arg1 : i32, i32, i32
  }
  func.func @transform_2(%arg0: i32, %arg1: i32) -> (i32, i32, i32) {
    %c0_i32 = arith.constant 0 : i32
    %c0_i32_0 = arith.constant 0 : i32
    return %arg0, %c0_i32, %arg1 : i32, i32, i32
  }
  func.func @transform_3(%arg0: i32, %arg1: i32) -> (i32, i32, i32) {
    %c0_i32 = arith.constant 0 : i32
    %c0_i32_0 = arith.constant 0 : i32
    return %arg0, %c0_i32, %arg1 : i32, i32, i32
  }
}

</mosaic_0001>

<llo_original>
// kernel: tpu_custom_call.1
$region0: #{tpu_custom_call.1}
  #allocation0 [shape = 'u32[]', space=smem, size = 0x4, offset = 0x4, fixed_abs, tag = 'smem constant byte address 0x4 - core index']
  #allocation1 [shape = 'u32[144,128]{1,0:T(1,128)}', space=vmem, size = 0x12000, scoped, tag = 'internal scratch']
  %s0 = inlined_call_operand.vmem [shape: f32[2,4,256], index: 0, kind: input, shape index: {}]
  %s1 = inlined_call_operand.vmem [shape: f32[2,6,256], index: 1, kind: input, shape index: {}]
  %s2 = inlined_call_operand.vmem [shape: f32[2,2,256], index: 2, kind: input, shape index: {}]
  %s3 = inlined_call_operand.vmem [shape: f32[2,12,256], index: 3, kind: output, shape index: {}]
  %s4 = sld [smem:[#allocation0]]
  $region22: #{tpu_custom_call.1} parent=0
    _
  %s6 = ssub.s32 1, %s4
  %s7 = scalar_select 0, %s6, %s4
  // Predicated region
  $region2: #{tpu_custom_call.1} parent=0 // pred_check
    _
  $region3: #{tpu_custom_call.1} parent=0 // pred_check_branch
    %9 = sbr.rel (0) target = $region5
  $region4: #{tpu_custom_call.1} parent=0 // pred_region
    _
  $region5: #{tpu_custom_call.1} parent=0 // pred_fallthru
    _
  // Predicated region
  $region6: #{tpu_custom_call.1} parent=0 // pred_check
    _
  $region7: #{tpu_custom_call.1} parent=0 // pred_check_branch
    %11 = sbr.rel (0) target = $region9
  $region8: #{tpu_custom_call.1} parent=0 // pred_region
    _
  $region9: #{tpu_custom_call.1} parent=0 // pred_fallthru
    _
  // Predicated region
  $region10: #{tpu_custom_call.1} parent=0 // pred_check
    _
  $region11: #{tpu_custom_call.1} parent=0 // pred_check_branch
    %13 = sbr.rel (0) target = $region13
  $region12: #{tpu_custom_call.1} parent=0 // pred_region
    _
  $region13: #{tpu_custom_call.1} parent=0 // pred_fallthru
    _
  %v14 = vld [vmem:[%s0] sm:$0xff]
  %v15 = vld [vmem:[%s0 + $0x8] sm:$0xff]
  %v18 = vcombine.high %v14, %v14
  %v19 = vcombine.high %v15, %v15
  %22 = vst [vmem:[%s3] sm:$0xf] %v14
  %23 = vst [vmem:[%s3 + $0x8] sm:$0xf] %v18
  %24 = vst [vmem:[%s3 + $0x20] sm:$0xf] %v15
  %25 = vst [vmem:[%s3 + $0x28] sm:$0xf] %v19
  %v26 = vld [vmem:[%s1] sm:$0x3f]
  %v27 = vld [vmem:[%s1 + $0x8] sm:$0x3f]
  %v28 = vld [vmem:[%s1 + $0x10] sm:$0x3f]
  %v29 = vld [vmem:[%s1 + $0x18] sm:$0x3f]
  %v34 = vrot.slane %v26, 4
  %v35 = vrot.slane %v27, 4
  %v36 = vrot.slane %v28, 4
  %v37 = vrot.slane %v29, 4
  %42 = vst [vmem:[%s3] sm:$0xf0] %v34
  %43 = vst [vmem:[%s3 + $0x8] sm:$0xf0] %v35
  %44 = vst [vmem:[%s3 + $0x10] sm:$0x3] %v34
  %45 = vst [vmem:[%s3 + $0x18] sm:$0x3] %v35
  %46 = vst [vmem:[%s3 + $0x20] sm:$0xf0] %v36
  %47 = vst [vmem:[%s3 + $0x28] sm:$0xf0] %v37
  %48 = vst [vmem:[%s3 + $0x30] sm:$0x3] %v36
  %49 = vst [vmem:[%s3 + $0x38] sm:$0x3] %v37
  %v50 = vld [vmem:[%s2] sm:$0xf]
  %v51 = vld [vmem:[%s2 + $0x4] sm:$0xf]
  %v54 = vcombine.low %v50, %v50
  %v56 = vunpack.c.l.s4 1983009808
  %v57 = vunpack.c.0.s8 %v56
  %v58 = vlaneseq
  %v59 = vshrl.u32 %v58, 7
  %v60 = vsub.s32 %v57, %v59
  %v61 = vrot.slane %v54, %v60
  %v62 = vcombine.high %v61, %v61
  %v63 = vcombine.low %v51, %v51
  %v65 = vunpack.c.l.s4 1983009808
  %v66 = vunpack.c.0.s8 %v65
  %v67 = vlaneseq
  %v68 = vshrl.u32 %v67, 7
  %v69 = vsub.s32 %v66, %v68
  %v70 = vrot.slane %v63, %v69
  %v71 = vcombine.high %v70, %v70
  %76 = vst [vmem:[%s3 + $0x10] sm:$0xc] %v61
  %77 = vst [vmem:[%s3 + $0x18] sm:$0xc] %v62
  %78 = vst [vmem:[%s3 + $0x30] sm:$0xc] %v70
  %79 = vst [vmem:[%s3 + $0x38] sm:$0xc] %v71
  // Predicated region
  $region14: #{tpu_custom_call.1} parent=0 // pred_check
    _
  $region15: #{tpu_custom_call.1} parent=0 // pred_check_branch
    %81 = sbr.rel (0) target = $region17
  $region16: #{tpu_custom_call.1} parent=0 // pred_region
    _
  $region17: #{tpu_custom_call.1} parent=0 // pred_fallthru
    _
  // Predicated region
  $region18: #{tpu_custom_call.1} parent=0 // pred_check
    _
  $region19: #{tpu_custom_call.1} parent=0 // pred_check_branch
    %83 = sbr.rel (0) target = $region21
  $region20: #{tpu_custom_call.1} parent=0 // pred_region
    _
  $region21: #{tpu_custom_call.1} parent=0 // pred_fallthru
    _

</llo_original>
